<compile_context>
chip_gen: v7x
topology: tpu7x:2x2x1
jax: 0.10.0
libtpu: 0.0.40
codegen_flags: <defaults>
</compile_context>

<pallas_src>
import functools

import jax
import jax.numpy as jnp
from jax.experimental import pallas as pl
from jax.experimental.pallas import tpu as pltpu


def _round_up(x, m):
    return (x + m - 1) // m * m


def _cdiv(a, b):
    return (a + b - 1) // b


def _vmem_physical_bytes():
    phys = 64 * 1024 * 1024  # conservative fallback (v7x-sized) if the query fails
    try:
        info = pltpu.get_tpu_info()
        phys = int(getattr(info, "vmem_capacity_bytes", phys))
    except Exception:
        pass
    return phys


def _mlp_kernel(x_ref, w1_ref, b1_ref, w2_ref, b2_ref, o_ref, acc_ref):
    k = pl.program_id(1)

    @pl.when(k == 0)
    def _():
        # Fold the fc2 bias into the accumulator init (saves the epilogue add).
        acc_ref[...] = jnp.broadcast_to(b2_ref[...], acc_ref.shape)

    # fc1 chunk: (tm, C_in) @ (C_in, th) — operands in the weight dtype, f32 accum.
    h = jnp.dot(x_ref[...].astype(w1_ref.dtype), w1_ref[...],
                preferred_element_type=jnp.float32)
    h = h + b1_ref[...]

    # Exact GELU (PyTorch nn.GELU default): 0.5 * x * (1 + erf(x / sqrt(2)))
    h = 0.5 * h * (1.0 + jax.lax.erf(h * jnp.float32(0.7071067811865476)))

    # fc2 partial product over this hidden chunk, accumulated in the f32 scratch.
    acc_ref[...] += jnp.dot(h.astype(w2_ref.dtype), w2_ref[...],
                            preferred_element_type=jnp.float32)

    @pl.when(k == pl.num_programs(1) - 1)
    def _():
        o_ref[...] = acc_ref[...].astype(o_ref.dtype)


@functools.partial(jax.jit, static_argnames=("matmul_dtype",))
def mlp_pallas(x, w1, b1, w2, b2, *, matmul_dtype=None):
    B, N, C_in = x.shape
    H = w1.shape[1]
    C_out = w2.shape[1]
    M = B * N

    mm_dtype = None if matmul_dtype is None else jnp.dtype(matmul_dtype)
    w_dtype = mm_dtype if mm_dtype is not None else jnp.dtype(w1.dtype)

    # Lane-dense channel padding (multiples of 128).
    C_in_p = _round_up(C_in, 128)
    C_out_p = _round_up(C_out, 128)
    H_128 = _round_up(H, 128)
    M_128 = _round_up(M, 128)

    x_bytes = jnp.dtype(x.dtype).itemsize
    w_bytes = jnp.dtype(w_dtype).itemsize

    phys = _vmem_physical_bytes()
    select_budget = int(phys * 0.80)   # for tile selection (footprint estimate)
    vmem_limit = int(phys * 0.90)      # compiler cap (headroom over the estimate)

    def footprint(tm, th):
        weights = 2 * (C_in_p * th + th * C_out_p) * w_bytes       # double-buffered
        biases = 2 * (th + C_out_p) * 4
        x_io = 2 * tm * C_in_p * x_bytes + 2 * tm * C_out_p * x_bytes
        acc = tm * C_out_p * 4
        inter = 3 * tm * th * 4        # f32 fc1 output block + GELU temporaries
        return weights + biases + x_io + acc + inter + (2 << 20)   # mosaic scratch

    # Keep >= 2 row tiles when possible so both v7x TensorCores get work.
    tm_cap = 128 if M_128 <= 128 else max(128, (M_128 // 2) // 128 * 128)
    tm_cap = min(tm_cap, 1024)
    tm_candidates = sorted({min(c, tm_cap) for c in (1024, 512, 384, 256, 128)},
                           reverse=True)
    # Prefer the weight-resident configuration (th == full padded hidden dim); only
    # fall back to hidden-dim chunking when it cannot fit the VMEM budget.
    th_candidates = sorted({min(c, H_128) for c in (H_128, 2048, 1024, 512, 256, 128)},
                           reverse=True)

    tm = th = None
    for th_c in th_candidates:
        for tm_c in tm_candidates:
            if footprint(tm_c, th_c) <= select_budget:
                tm, th = tm_c, th_c
                break
        if tm is not None:
            break
    if tm is None:
        tm, th = 128, 128  # minimal fallback for exotic shapes

    # Rebalance tiles to minimize zero padding (never grows the footprint).
    n_m = _cdiv(M_128, tm)
    tm = _round_up(_cdiv(M_128, n_m), 128)
    M_p = n_m * tm
    n_h = _cdiv(H_128, th)
    th = _round_up(_cdiv(H_128, n_h), 128)
    H_p = n_h * th

    # Zero-padding is exact: GELU(0) == 0 and zero weight rows/cols contribute nothing.
    # Skip the pad (an extra HBM copy of the activations) when nothing needs padding.
    x2 = x.reshape(M, C_in)
    if M_p != M or C_in_p != C_in:
        x2 = jnp.pad(x2, ((0, M_p - M), (0, C_in_p - C_in)))

    w1_p = w1.astype(w_dtype)
    if C_in_p != C_in or H_p != H:
        w1_p = jnp.pad(w1_p, ((0, C_in_p - C_in), (0, H_p - H)))
    w2_p = w2.astype(w_dtype)
    if H_p != H or C_out_p != C_out:
        w2_p = jnp.pad(w2_p, ((0, H_p - H), (0, C_out_p - C_out)))

    b1_p = jnp.pad(b1.astype(jnp.float32), (0, H_p - H)).reshape(1, H_p)
    b2_p = jnp.pad(b2.astype(jnp.float32), (0, C_out_p - C_out)).reshape(1, C_out_p)

    out = pl.pallas_call(
        _mlp_kernel,
        out_shape=jax.ShapeDtypeStruct((M_p, C_out_p), x.dtype),
        grid_spec=pltpu.PrefetchScalarGridSpec(
            num_scalar_prefetch=0,
            grid=(M_p // tm, H_p // th),
            in_specs=[
                pl.BlockSpec((tm, C_in_p), lambda i, k: (i, 0)),    # x row tile
                pl.BlockSpec((C_in_p, th), lambda i, k: (0, k)),    # fc1 weight chunk
                pl.BlockSpec((1, th), lambda i, k: (0, k)),         # fc1 bias chunk
                pl.BlockSpec((th, C_out_p), lambda i, k: (k, 0)),   # fc2 weight chunk
                pl.BlockSpec((1, C_out_p), lambda i, k: (0, 0)),    # fc2 bias
            ],
            out_specs=pl.BlockSpec((tm, C_out_p), lambda i, k: (i, 0)),
            scratch_shapes=[pltpu.VMEM((tm, C_out_p), jnp.float32)],
        ),
        compiler_params=pltpu.CompilerParams(
            dimension_semantics=("parallel", "arbitrary"),
            vmem_limit_bytes=vmem_limit,
        ),
    )(x2, w1_p, b1_p, w2_p, b2_p)

    if M_p != M or C_out_p != C_out:
        out = out[:M, :C_out]
    return out.reshape(B, N, C_out)


def mlp_reference(x, w1, b1, w2, b2):
    h = jnp.einsum("bnc,ch->bnh", x, w1) + b1
    h = 0.5 * h * (1.0 + jax.lax.erf(h / jnp.sqrt(2.0).astype(h.dtype)))
    return jnp.einsum("bnh,ho->bno", h, w2) + b2


if __name__ == "__main__":
    # Small shapes consistent with the module: tokens (B, N, C_in).
    B, N = 2, 64
    in_features, hidden_features, out_features = 32, 64, 32

    key = jax.random.PRNGKey(0)
    kx, k1, k2, k3, k4 = jax.random.split(key, 5)

    x = jax.random.normal(kx, (B, N, in_features), dtype=jnp.float32)
    # torch stores Linear weight as (out, in); we keep the transposed (in, out) layout.
    w1 = jax.random.normal(k1, (in_features, hidden_features), jnp.float32) * 0.05
    b1 = jax.random.normal(k2, (hidden_features,), jnp.float32) * 0.05
    w2 = jax.random.normal(k3, (hidden_features, out_features), jnp.float32) * 0.05
    b2 = jax.random.normal(k4, (out_features,), jnp.float32) * 0.05

    ref = mlp_reference(x, w1, b1, w2, b2)

    # Default path: f32 operands with f32 accumulation (faithful to the module).
    out = jax.block_until_ready(mlp_pallas(x, w1, b1, w2, b2))
    assert out.shape == (B, N, out_features)
    assert jnp.allclose(out, ref, atol=1e-5, rtol=1e-5), "f32 path mismatch vs reference"

    # Optional bf16-MXU path (flagged numerics change; f32 accumulation retained).
    out_bf16 = jax.block_until_ready(
        mlp_pallas(x, w1, b1, w2, b2, matmul_dtype="bfloat16"))
    assert jnp.allclose(out_bf16, ref, atol=3e-2, rtol=3e-2), "bf16 path mismatch"

    print("KERNEL_OK")
</pallas_src>

<mosaic_0001>
module attributes {stable_mosaic.version = 11 : i64} {
  func.func @_mlp_kernel(%arg0: i32, %arg1: i32, %arg2: memref<128x128xf32, #tpu.memory_space<vmem>>, %arg3: memref<128x128xf32, #tpu.memory_space<vmem>>, %arg4: memref<1x128xf32, #tpu.memory_space<vmem>>, %arg5: memref<128x128xf32, #tpu.memory_space<vmem>>, %arg6: memref<1x128xf32, #tpu.memory_space<vmem>>, %arg7: memref<128x128xf32, #tpu.memory_space<vmem>>, %arg8: memref<128x128xf32, #tpu.memory_space<vmem>>) attributes {dimension_semantics = [#tpu.dimension_semantics<parallel>, #tpu.dimension_semantics<arbitrary>], iteration_bounds = array<i64: 1, 1>, scalar_prefetch = 0 : i64, scratch_operands = 1 : i64, tpu.core_type = #tpu.core_type<tc>, window_params = [{transform_indices = @transform_0, window_bounds = array<i64: 128, 128>}, {transform_indices = @transform_1, window_bounds = array<i64: 128, 128>}, {transform_indices = @transform_2, window_bounds = array<i64: 1, 128>}, {transform_indices = @transform_3, window_bounds = array<i64: 128, 128>}, {pipeline_mode = #tpu.pipeline_mode<synchronous>, transform_indices = @transform_4, window_bounds = array<i64: 1, 128>}, {transform_indices = @transform_5, window_bounds = array<i64: 128, 128>}]} {
    %c0_i32 = arith.constant 0 : i32
    %0 = arith.cmpi eq, %arg1, %c0_i32 : i32
    %1 = arith.extui %0 : i1 to i32
    %c0_i32_0 = arith.constant 0 : i32
    %2 = arith.cmpi ne, %1, %c0_i32_0 : i32
    scf.if %2 {
      %c0_18 = arith.constant 0 : index
      %c0_19 = arith.constant 0 : index
      %25 = vector.load %arg6[%c0_18, %c0_19] : memref<1x128xf32, #tpu.memory_space<vmem>>, vector<1x128xf32>
      %26 = vector.shape_cast %25 : vector<1x128xf32> to vector<1x128xf32>
      %27 = vector.broadcast %26 : vector<1x128xf32> to vector<128x128xf32>
      %c0_20 = arith.constant 0 : index
      %c0_21 = arith.constant 0 : index
      %28 = vector.load %arg8[%c0_20, %c0_21] : memref<128x128xf32, #tpu.memory_space<vmem>>, vector<128x128xf32>
      tpu.vector_store %arg8[%c0_20, %c0_21], %27 {strides = array<i32>} : memref<128x128xf32, #tpu.memory_space<vmem>>, vector<128x128xf32>,
    } else {
    }
    %c0 = arith.constant 0 : index
    %c0_1 = arith.constant 0 : index
    %3 = vector.load %arg2[%c0, %c0_1] : memref<128x128xf32, #tpu.memory_space<vmem>>, vector<128x128xf32>
    %c0_2 = arith.constant 0 : index
    %c0_3 = arith.constant 0 : index
    %4 = vector.load %arg3[%c0_2, %c0_3] : memref<128x128xf32, #tpu.memory_space<vmem>>, vector<128x128xf32>
    %cst = arith.constant dense<0.000000e+00> : vector<128x128xf32>
    %5 = tpu.matmul %3, %4, %cst {dimension_numbers = #tpu.dot_dimension_numbers<[1], [0], [0], [1], [0, 0, 1, 1], [], []>} : vector<128x128xf32>, vector<128x128xf32>, vector<128x128xf32> -> vector<128x128xf32>
    %c0_4 = arith.constant 0 : index
    %c0_5 = arith.constant 0 : index
    %6 = vector.load %arg4[%c0_4, %c0_5] : memref<1x128xf32, #tpu.memory_space<vmem>>, vector<1x128xf32>
    %7 = vector.broadcast %6 : vector<1x128xf32> to vector<128x128xf32>
    %8 = arith.addf %5, %7 : vector<128x128xf32>
    %cst_6 = arith.constant 5.000000e-01 : f32
    %9 = vector.broadcast %cst_6 : f32 to vector<128x128xf32>
    %10 = arith.mulf %9, %8 : vector<128x128xf32>
    %cst_7 = arith.constant 0.707106769 : f32
    %11 = vector.broadcast %cst_7 : f32 to vector<128x128xf32>
    %12 = arith.mulf %8, %11 : vector<128x128xf32>
    %13 = math.erf %12 : vector<128x128xf32>
    %cst_8 = arith.constant 1.000000e+00 : f32
    %14 = vector.broadcast %cst_8 : f32 to vector<128x128xf32>
    %15 = arith.addf %14, %13 : vector<128x128xf32>
    %16 = arith.mulf %10, %15 : vector<128x128xf32>
    %c0_9 = arith.constant 0 : index
    %c0_10 = arith.constant 0 : index
    %17 = vector.load %arg8[%c0_9, %c0_10] : memref<128x128xf32, #tpu.memory_space<vmem>>, vector<128x128xf32>
    %c0_11 = arith.constant 0 : index
    %c0_12 = arith.constant 0 : index
    %18 = vector.load %arg5[%c0_11, %c0_12] : memref<128x128xf32, #tpu.memory_space<vmem>>, vector<128x128xf32>
    %cst_13 = arith.constant dense<0.000000e+00> : vector<128x128xf32>
    %19 = tpu.matmul %16, %18, %cst_13 {dimension_numbers = #tpu.dot_dimension_numbers<[1], [0], [0], [1], [0, 0, 1, 1], [], []>} : vector<128x128xf32>, vector<128x128xf32>, vector<128x128xf32> -> vector<128x128xf32>
    %20 = arith.addf %17, %19 : vector<128x128xf32>
    %c0_14 = arith.constant 0 : index
    %c0_15 = arith.constant 0 : index
    %21 = vector.load %arg8[%c0_14, %c0_15] : memref<128x128xf32, #tpu.memory_space<vmem>>, vector<128x128xf32>
    tpu.vector_store %arg8[%c0_14, %c0_15], %20 {strides = array<i32>} : memref<128x128xf32, #tpu.memory_space<vmem>>, vector<128x128xf32>,
    %c0_i32_16 = arith.constant 0 : i32
    %22 = arith.cmpi eq, %arg1, %c0_i32_16 : i32
    %23 = arith.extui %22 : i1 to i32
    %c0_i32_17 = arith.constant 0 : i32
    %24 = arith.cmpi ne, %23, %c0_i32_17 : i32
    scf.if %24 {
      %c0_18 = arith.constant 0 : index
      %c0_19 = arith.constant 0 : index
      %25 = vector.load %arg8[%c0_18, %c0_19] : memref<128x128xf32, #tpu.memory_space<vmem>>, vector<128x128xf32>
      %c0_20 = arith.constant 0 : index
      %c0_21 = arith.constant 0 : index
      %26 = vector.load %arg7[%c0_20, %c0_21] : memref<128x128xf32, #tpu.memory_space<vmem>>, vector<128x128xf32>
      tpu.vector_store %arg7[%c0_20, %c0_21], %25 {strides = array<i32>} : memref<128x128xf32, #tpu.memory_space<vmem>>, vector<128x128xf32>,
    } else {
    }
    return
  }
  func.func @transform_0(%arg0: i32, %arg1: i32) -> (i32, i32) {
    %c0_i32 = arith.constant 0 : i32
    %c0_i32_0 = arith.constant 0 : i32
    return %arg0, %c0_i32 : i32, i32
  }
  func.func @transform_1(%arg0: i32, %arg1: i32) -> (i32, i32) {
    %c0_i32 = arith.constant 0 : i32
    %c0_i32_0 = arith.constant 0 : i32
    return %c0_i32, %arg1 : i32, i32
  }
  func.func @transform_2(%arg0: i32, %arg1: i32) -> (i32, i32) {
    %c0_i32 = arith.constant 0 : i32
    %c0_i32_0 = arith.constant 0 : i32
    return %c0_i32, %arg1 : i32, i32
  }
  func.func @transform_3(%arg0: i32, %arg1: i32) -> (i32, i32) {
    %c0_i32 = arith.constant 0 : i32
    %c0_i32_0 = arith.constant 0 : i32
    return %arg1, %c0_i32 : i32, i32
  }
  func.func @transform_4(%arg0: i32, %arg1: i32) -> (i32, i32) {
    %c0_i32 = arith.constant 0 : i32
    %c0_i32_0 = arith.constant 0 : i32
    %c0_i32_1 = arith.constant 0 : i32
    return %c0_i32, %c0_i32_0 : i32, i32
  }
  func.func @transform_5(%arg0: i32, %arg1: i32) -> (i32, i32) {
    %c0_i32 = arith.constant 0 : i32
    %c0_i32_0 = arith.constant 0 : i32
    return %arg0, %c0_i32 : i32, i32
  }
}

</mosaic_0001>

<llo_original>
// kernel: mlp_pallas.1
$region0: #{mlp_pallas.1}
  #allocation0 [shape = 'u32[]', space=smem, size = 0x4, offset = 0x4, fixed_abs, tag = 'smem constant byte address 0x4 - core index']
  #allocation1 [shape = 'u32[144,128]{1,0:T(1,128)}', space=vmem, size = 0x12000, scoped, tag = 'internal scratch']
  #allocation2 [shape = 'f32[128,128]{1,0:T(8,128)}', space=vmem, size = 0x10000, scoped, tag = 'scratch operand']
  %s0 = inlined_call_operand.vmem [shape: f32[128,128], index: 0, kind: input, shape index: {}]
  %s1 = inlined_call_operand.vmem [shape: f32[128,128], index: 1, kind: input, shape index: {}]
  %s2 = inlined_call_operand.vmem [shape: f32[1,128], index: 2, kind: input, shape index: {}]
  %s3 = inlined_call_operand.vmem [shape: f32[128,128], index: 3, kind: input, shape index: {}]
  %s4 = inlined_call_operand.vmem [shape: f32[1,128], index: 4, kind: input, shape index: {}]
  %s5 = inlined_call_operand.vmem [shape: f32[128,128], index: 5, kind: output, shape index: {}]
  %s6 = sld [smem:[#allocation0]]
  $region38: #{mlp_pallas.1} parent=0
    _
  %s8 = ssub.s32 1, %s6
  %s9 = scalar_select 0, %s8, %s6
  // Predicated region
  $region2: #{mlp_pallas.1} parent=0 // pred_check
    _
  $region3: #{mlp_pallas.1} parent=0 // pred_check_branch
    %11 = sbr.rel (0) target = $region5
  $region4: #{mlp_pallas.1} parent=0 // pred_region
    _
  $region5: #{mlp_pallas.1} parent=0 // pred_fallthru
    _
  // Predicated region
  $region6: #{mlp_pallas.1} parent=0 // pred_check
    _
  $region7: #{mlp_pallas.1} parent=0 // pred_check_branch
    %13 = sbr.rel (0) target = $region9
  $region8: #{mlp_pallas.1} parent=0 // pred_region
    _
  $region9: #{mlp_pallas.1} parent=0 // pred_fallthru
    _
  // Predicated region
  $region10: #{mlp_pallas.1} parent=0 // pred_check
    _
  $region11: #{mlp_pallas.1} parent=0 // pred_check_branch
    %15 = sbr.rel (0) target = $region13
  $region12: #{mlp_pallas.1} parent=0 // pred_region
    _
  $region13: #{mlp_pallas.1} parent=0 // pred_fallthru
    _
  // Predicated region
  $region14: #{mlp_pallas.1} parent=0 // pred_check
    _
  $region15: #{mlp_pallas.1} parent=0 // pred_check_branch
    %17 = sbr.rel (0) target = $region17
  $region16: #{mlp_pallas.1} parent=0 // pred_region
    _
  $region17: #{mlp_pallas.1} parent=0 // pred_fallthru
    _
  // Predicated region
  $region18: #{mlp_pallas.1} parent=0 // pred_check
    _
  $region19: #{mlp_pallas.1} parent=0 // pred_check_branch
    %19 = sbr.rel (0) target = $region21
  $region20: #{mlp_pallas.1} parent=0 // pred_region
    _
  $region21: #{mlp_pallas.1} parent=0 // pred_fallthru
    _
  %p20 = scmp.eq.s32.totalorder 0, 0
  // Predicated region
  $region22: #{mlp_pallas.1} parent=0 // pred_check
    %p21 = pneg %p20
  $region23: #{mlp_pallas.1} parent=0 // pred_check_branch
    %23 = sbr.rel (%p21) target = $region25
  $region24: #{mlp_pallas.1} parent=0 // pred_region
    %v24 = vld [vmem:[%s4] sm:$0x1]
    %v26 = vlaneseq
    %v27 = vshrl.u32 %v26, 7
    %v28 = vsub.s32 0, %v27
    %v29 = vrot.slane %v24, %v28
    %31 = vst [vmem:[#allocation2] sm:$0xff] %v29
    %32 = vst [vmem:[#allocation2 + $0x8] sm:$0xff] %v29
    %33 = vst [vmem:[#allocation2 + $0x10] sm:$0xff] %v29
    %34 = vst [vmem:[#allocation2 + $0x18] sm:$0xff] %v29
    %35 = vst [vmem:[#allocation2 + $0x20] sm:$0xff] %v29
    %36 = vst [vmem:[#allocation2 + $0x28] sm:$0xff] %v29
    %37 = vst [vmem:[#allocation2 + $0x30] sm:$0xff] %v29
    %38 = vst [vmem:[#allocation2 + $0x38] sm:$0xff] %v29
    %39 = vst [vmem:[#allocation2 + $0x40] sm:$0xff] %v29
    %40 = vst [vmem:[#allocation2 + $0x48] sm:$0xff] %v29
    %41 = vst [vmem:[#allocation2 + $0x50] sm:$0xff] %v29
    %42 = vst [vmem:[#allocation2 + $0x58] sm:$0xff] %v29
    %43 = vst [vmem:[#allocation2 + $0x60] sm:$0xff] %v29
    %44 = vst [vmem:[#allocation2 + $0x68] sm:$0xff] %v29
    %45 = vst [vmem:[#allocation2 + $0x70] sm:$0xff] %v29
    %46 = vst [vmem:[#allocation2 + $0x78] sm:$0xff] %v29
  $region25: #{mlp_pallas.1} parent=0 // pred_fallthru
    _
  %v47 = vld [vmem:[%s0] sm:$0xff]
  %v48 = vld [vmem:[%s0 + $0x8] sm:$0xff]
  %v49 = vld [vmem:[%s0 + $0x10] sm:$0xff]
  %v50 = vld [vmem:[%s0 + $0x18] sm:$0xff]
  %v51 = vld [vmem:[%s0 + $0x20] sm:$0xff]
  %v52 = vld [vmem:[%s0 + $0x28] sm:$0xff]
  %v53 = vld [vmem:[%s0 + $0x30] sm:$0xff]
  %v54 = vld [vmem:[%s0 + $0x38] sm:$0xff]
  %v55 = vld [vmem:[%s0 + $0x40] sm:$0xff]
  %v56 = vld [vmem:[%s0 + $0x48] sm:$0xff]
  %v57 = vld [vmem:[%s0 + $0x50] sm:$0xff]
  %v58 = vld [vmem:[%s0 + $0x58] sm:$0xff]
  %v59 = vld [vmem:[%s0 + $0x60] sm:$0xff]
  %v60 = vld [vmem:[%s0 + $0x68] sm:$0xff]
  %v61 = vld [vmem:[%s0 + $0x70] sm:$0xff]
  %v62 = vld [vmem:[%s0 + $0x78] sm:$0xff]
  %v63 = vld [vmem:[%s1] sm:$0xff]
  %v64 = vld [vmem:[%s1 + $0x8] sm:$0xff]
  %v65 = vld [vmem:[%s1 + $0x10] sm:$0xff]
  %v66 = vld [vmem:[%s1 + $0x18] sm:$0xff]
  %v67 = vld [vmem:[%s1 + $0x20] sm:$0xff]
  %v68 = vld [vmem:[%s1 + $0x28] sm:$0xff]
  %v69 = vld [vmem:[%s1 + $0x30] sm:$0xff]
  %v70 = vld [vmem:[%s1 + $0x38] sm:$0xff]
  %v71 = vld [vmem:[%s1 + $0x40] sm:$0xff]
  %v72 = vld [vmem:[%s1 + $0x48] sm:$0xff]
  %v73 = vld [vmem:[%s1 + $0x50] sm:$0xff]
  %v74 = vld [vmem:[%s1 + $0x58] sm:$0xff]
  %v75 = vld [vmem:[%s1 + $0x60] sm:$0xff]
  %v76 = vld [vmem:[%s1 + $0x68] sm:$0xff]
  %v77 = vld [vmem:[%s1 + $0x70] sm:$0xff]
  %v78 = vld [vmem:[%s1 + $0x78] sm:$0xff]
  %v79 = vld [vmem:[%s2] sm:$0x1]
  %v81 = vlaneseq
  %v82 = vshrl.u32 %v81, 7
  %v83 = vsub.s32 0, %v82
  %v84 = vrot.slane %v79, %v83
  %86 = vmatprep.subr.mxu0 0.0
  %87 = vmatpush1.msra.mxu0 %v63
  %88 = vmatprep.subr.mxu0 0.0
  %89 = vmatpush1.msra.mxu0 %v64
  %90 = vmatprep.subr.mxu0 0.0
  %91 = vmatpush1.msra.mxu0 %v65
  %92 = vmatprep.subr.mxu0 0.0
  %93 = vmatpush1.msra.mxu0 %v66
  %94 = vmatprep.subr.mxu0 0.0
  %95 = vmatpush1.msra.mxu0 %v67
  %96 = vmatprep.subr.mxu0 0.0
  %97 = vmatpush1.msra.mxu0 %v68
  %98 = vmatprep.subr.mxu0 0.0
  %99 = vmatpush1.msra.mxu0 %v69
  %100 = vmatprep.subr.mxu0 0.0
  %101 = vmatpush1.msra.mxu0 %v70
  %102 = vmatprep.subr.mxu0 0.0
  %103 = vmatpush1.msra.mxu0 %v71
  %104 = vmatprep.subr.mxu0 0.0
  %105 = vmatpush1.msra.mxu0 %v72
  %106 = vmatprep.subr.mxu0 0.0
  %107 = vmatpush1.msra.mxu0 %v73
  %108 = vmatprep.subr.mxu0 0.0
  %109 = vmatpush1.msra.mxu0 %v74
  %110 = vmatprep.subr.mxu0 0.0
  %111 = vmatpush1.msra.mxu0 %v75
  %112 = vmatprep.subr.mxu0 0.0
  %113 = vmatpush1.msra.mxu0 %v76
  %114 = vmatprep.subr.mxu0 0.0
  %115 = vmatpush1.msra.mxu0 %v77
  %116 = vmatprep.subr.mxu0 0.0
  %117 = vmatpush1.msra.mxu0 %v78
  %118 = vmatprep.subr.mxu0 0.0
  %119 = vmatpush1.msra.mxu0 0.0
  %120 = vmatprep.subr.mxu0 0.0
  %121 = vmatpush1.msra.mxu0 0.0
  %122 = vmatprep.subr.mxu0 0.0
  %123 = vmatpush1.msra.mxu0 0.0
  %124 = vmatprep.subr.mxu0 0.0
  %125 = vmatpush1.msra.mxu0 0.0
  %126 = vmatprep.subr.mxu0 0.0
  %127 = vmatpush1.msra.mxu0 0.0
  %128 = vmatprep.subr.mxu0 0.0
  %129 = vmatpush1.msra.mxu0 0.0
  %130 = vmatprep.subr.mxu0 0.0
  %131 = vmatpush1.msra.mxu0 0.0
  %132 = vmatprep.subr.mxu0 0.0
  %133 = vmatpush1.msra.mxu0 0.0
  %134 = vmatprep.subr.mxu0 0.0
  %135 = vmatpush1.msra.mxu0 0.0
  %136 = vmatprep.subr.mxu0 0.0
  %137 = vmatpush1.msra.mxu0 0.0
  %138 = vmatprep.subr.mxu0 0.0
  %139 = vmatpush1.msra.mxu0 0.0
  %140 = vmatprep.subr.mxu0 0.0
  %141 = vmatpush1.msra.mxu0 0.0
  %142 = vmatprep.subr.mxu0 0.0
  %143 = vmatpush1.msra.mxu0 0.0
  %144 = vmatprep.subr.mxu0 0.0
  %145 = vmatpush1.msra.mxu0 0.0
  %146 = vmatprep.subr.mxu0 0.0
  %147 = vmatpush1.msra.mxu0 0.0
  %148 = vmatprep.subr.mxu0 0.0
  %149 = vmatpush1.msra.mxu0 0.0
  %150 = vmatprep.mubr.f32.mxu0 0.0
  %151 = vmatmul.mubr.f32.gmra.mrb[0].mxu0 %v47
  %v152 = vpop.f32.mrb[0].mxu0
  %v153 = vadd.f32 %v84, %v152
  %v154 = vpop.f32.mrb[0].mxu0
  %155 = vmatprep.mubr.f32.mxu0 0.0
  %156 = vmatmul.mubr.f32.gmra.mrb[0].mxu0 %v48
  %v157 = vpop.f32.mrb[0].mxu0
  %v158 = vadd.f32 %v84, %v157
  %v159 = vpop.f32.mrb[0].mxu0
  %160 = vmatprep.mubr.f32.mxu0 0.0
  %161 = vmatmul.mubr.f32.gmra.mrb[0].mxu0 %v49
  %v162 = vpop.f32.mrb[0].mxu0
  %v163 = vadd.f32 %v84, %v162
  %v164 = vpop.f32.mrb[0].mxu0
  %165 = vmatprep.mubr.f32.mxu0 0.0
  %166 = vmatmul.mubr.f32.gmra.mrb[0].mxu0 %v50
  %v167 = vpop.f32.mrb[0].mxu0
  %v168 = vadd.f32 %v84, %v167
  %v169 = vpop.f32.mrb[0].mxu0
  %170 = vmatprep.mubr.f32.mxu0 0.0
  %171 = vmatmul.mubr.f32.gmra.mrb[0].mxu0 %v51
  %v172 = vpop.f32.mrb[0].mxu0
  %v173 = vadd.f32 %v84, %v172
  %v174 = vpop.f32.mrb[0].mxu0
  %175 = vmatprep.mubr.f32.mxu0 0.0
  %176 = vmatmul.mubr.f32.gmra.mrb[0].mxu0 %v52
  %v177 = vpop.f32.mrb[0].mxu0
  %v178 = vadd.f32 %v84, %v177
  %v179 = vpop.f32.mrb[0].mxu0
  %180 = vmatprep.mubr.f32.mxu0 0.0
  %181 = vmatmul.mubr.f32.gmra.mrb[0].mxu0 %v53
  %v182 = vpop.f32.mrb[0].mxu0
  %v183 = vadd.f32 %v84, %v182
  %v184 = vpop.f32.mrb[0].mxu0
  %185 = vmatprep.mubr.f32.mxu0 0.0
  %186 = vmatmul.mubr.f32.gmra.mrb[0].mxu0 %v54
  %v187 = vpop.f32.mrb[0].mxu0
  %v188 = vadd.f32 %v84, %v187
  %v189 = vpop.f32.mrb[0].mxu0
  %190 = vmatprep.mubr.f32.mxu0 0.0
  %191 = vmatmul.mubr.f32.gmra.mrb[0].mxu0 %v55
  %v192 = vpop.f32.mrb[0].mxu0
  %v193 = vadd.f32 %v84, %v192
  %v194 = vpop.f32.mrb[0].mxu0
  %195 = vmatprep.mubr.f32.mxu0 0.0
  %196 = vmatmul.mubr.f32.gmra.mrb[0].mxu0 %v56
  %v197 = vpop.f32.mrb[0].mxu0
  %v198 = vadd.f32 %v84, %v197
  %v199 = vpop.f32.mrb[0].mxu0
  %200 = vmatprep.mubr.f32.mxu0 0.0
  %201 = vmatmul.mubr.f32.gmra.mrb[0].mxu0 %v57
  %v202 = vpop.f32.mrb[0].mxu0
  %v203 = vadd.f32 %v84, %v202
  %v204 = vpop.f32.mrb[0].mxu0
  %205 = vmatprep.mubr.f32.mxu0 0.0
  %206 = vmatmul.mubr.f32.gmra.mrb[0].mxu0 %v58
  %v207 = vpop.f32.mrb[0].mxu0
  %v208 = vadd.f32 %v84, %v207
  %v209 = vpop.f32.mrb[0].mxu0
  %210 = vmatprep.mubr.f32.mxu0 0.0
  %211 = vmatmul.mubr.f32.gmra.mrb[0].mxu0 %v59
  %v212 = vpop.f32.mrb[0].mxu0
  %v213 = vadd.f32 %v84, %v212
  %v214 = vpop.f32.mrb[0].mxu0
  %215 = vmatprep.mubr.f32.mxu0 0.0
  %216 = vmatmul.mubr.f32.gmra.mrb[0].mxu0 %v60
  %v217 = vpop.f32.mrb[0].mxu0
  %v218 = vadd.f32 %v84, %v217
  %v219 = vpop.f32.mrb[0].mxu0
  %220 = vmatprep.mubr.f32.mxu0 0.0
  %221 = vmatmul.mubr.f32.gmra.mrb[0].mxu0 %v61
  %v222 = vpop.f32.mrb[0].mxu0
  %v223 = vadd.f32 %v84, %v222
  %v224 = vpop.f32.mrb[0].mxu0
  %225 = vmatprep.mubr.f32.mxu0 0.0
  %226 = vmatmul.mubr.f32.gmra.mrb[0].mxu0 %v62
  %v227 = vpop.f32.mrb[0].mxu0
  %v228 = vadd.f32 %v84, %v227
  %v229 = vpop.f32.mrb[0].mxu0
  %230 = vdwg.mxu0
  %v231 = vmul.f32 %v153, 0.5
  %v232 = vmul.f32 %v158, 0.5
  %v233 = vmul.f32 %v163, 0.5
  %v234 = vmul.f32 %v168, 0.5
  %v235 = vmul.f32 %v173, 0.5
  %v236 = vmul.f32 %v178, 0.5
  %v237 = vmul.f32 %v183, 0.5
  %v238 = vmul.f32 %v188, 0.5
  %v239 = vmul.f32 %v193, 0.5
  %v240 = vmul.f32 %v198, 0.5
  %v241 = vmul.f32 %v203, 0.5
  %v242 = vmul.f32 %v208, 0.5
  %v243 = vmul.f32 %v213, 0.5
  %v244 = vmul.f32 %v218, 0.5
  %v245 = vmul.f32 %v223, 0.5
  %v246 = vmul.f32 %v228, 0.5
  %v247 = vmul.f32 %v153, 0.70710677
  %v248 = vmul.f32 %v158, 0.70710677
  %v249 = vmul.f32 %v163, 0.70710677
  %v250 = vmul.f32 %v168, 0.70710677
  %v251 = vmul.f32 %v173, 0.70710677
  %v252 = vmul.f32 %v178, 0.70710677
  %v253 = vmul.f32 %v183, 0.70710677
  %v254 = vmul.f32 %v188, 0.70710677
  %v255 = vmul.f32 %v193, 0.70710677
  %v256 = vmul.f32 %v198, 0.70710677
  %v257 = vmul.f32 %v203, 0.70710677
  %v258 = vmul.f32 %v208, 0.70710677
  %v259 = vmul.f32 %v213, 0.70710677
  %v260 = vmul.f32 %v218, 0.70710677
  %v261 = vmul.f32 %v223, 0.70710677
  %v262 = vmul.f32 %v228, 0.70710677
  %v263 = verf.f32.pop %v247
  %v264 = verf.f32.pop %v248
  %v265 = verf.f32.pop %v249
  %v266 = verf.f32.pop %v250
  %v267 = verf.f32.pop %v251
  %v268 = verf.f32.pop %v252
  %v269 = verf.f32.pop %v253
  %v270 = verf.f32.pop %v254
  %v271 = verf.f32.pop %v255
  %v272 = verf.f32.pop %v256
  %v273 = verf.f32.pop %v257
  %v274 = verf.f32.pop %v258
  %v275 = verf.f32.pop %v259
  %v276 = verf.f32.pop %v260
  %v277 = verf.f32.pop %v261
  %v278 = verf.f32.pop %v262
  %v279 = vadd.f32 %v263, 1.0
  %v280 = vadd.f32 %v264, 1.0
  %v281 = vadd.f32 %v265, 1.0
  %v282 = vadd.f32 %v266, 1.0
  %v283 = vadd.f32 %v267, 1.0
  %v284 = vadd.f32 %v268, 1.0
  %v285 = vadd.f32 %v269, 1.0
  %v286 = vadd.f32 %v270, 1.0
  %v287 = vadd.f32 %v271, 1.0
  %v288 = vadd.f32 %v272, 1.0
  %v289 = vadd.f32 %v273, 1.0
  %v290 = vadd.f32 %v274, 1.0
  %v291 = vadd.f32 %v275, 1.0
  %v292 = vadd.f32 %v276, 1.0
  %v293 = vadd.f32 %v277, 1.0
  %v294 = vadd.f32 %v278, 1.0
  %v295 = vmul.f32 %v231, %v279
  %v296 = vmul.f32 %v232, %v280
  %v297 = vmul.f32 %v233, %v281
  %v298 = vmul.f32 %v234, %v282
  %v299 = vmul.f32 %v235, %v283
  %v300 = vmul.f32 %v236, %v284
  %v301 = vmul.f32 %v237, %v285
  %v302 = vmul.f32 %v238, %v286
  %v303 = vmul.f32 %v239, %v287
  %v304 = vmul.f32 %v240, %v288
  %v305 = vmul.f32 %v241, %v289
  %v306 = vmul.f32 %v242, %v290
  %v307 = vmul.f32 %v243, %v291
  %v308 = vmul.f32 %v244, %v292
  %v309 = vmul.f32 %v245, %v293
  %v310 = vmul.f32 %v246, %v294
  %v311 = vld [vmem:[#allocation2] sm:$0xff]
  %v312 = vld [vmem:[#allocation2 + $0x8] sm:$0xff]
  %v313 = vld [vmem:[#allocation2 + $0x10] sm:$0xff]
  %v314 = vld [vmem:[#allocation2 + $0x18] sm:$0xff]
  %v315 = vld [vmem:[#allocation2 + $0x20] sm:$0xff]
  %v316 = vld [vmem:[#allocation2 + $0x28] sm:$0xff]
  %v317 = vld [vmem:[#allocation2 + $0x30] sm:$0xff]
  %v318 = vld [vmem:[#allocation2 + $0x38] sm:$0xff]
  %v319 = vld [vmem:[#allocation2 + $0x40] sm:$0xff]
  %v320 = vld [vmem:[#allocation2 + $0x48] sm:$0xff]
  %v321 = vld [vmem:[#allocation2 + $0x50] sm:$0xff]
  %v322 = vld [vmem:[#allocation2 + $0x58] sm:$0xff]
  %v323 = vld [vmem:[#allocation2 + $0x60] sm:$0xff]
  %v324 = vld [vmem:[#allocation2 + $0x68] sm:$0xff]
  %v325 = vld [vmem:[#allocation2 + $0x70] sm:$0xff]
  %v326 = vld [vmem:[#allocation2 + $0x78] sm:$0xff]
  %v327 = vld [vmem:[%s3] sm:$0xff]
  %v328 = vld [vmem:[%s3 + $0x8] sm:$0xff]
  %v329 = vld [vmem:[%s3 + $0x10] sm:$0xff]
  %v330 = vld [vmem:[%s3 + $0x18] sm:$0xff]
  %v331 = vld [vmem:[%s3 + $0x20] sm:$0xff]
  %v332 = vld [vmem:[%s3 + $0x28] sm:$0xff]
  %v333 = vld [vmem:[%s3 + $0x30] sm:$0xff]
  %v334 = vld [vmem:[%s3 + $0x38] sm:$0xff]
  %v335 = vld [vmem:[%s3 + $0x40] sm:$0xff]
  %v336 = vld [vmem:[%s3 + $0x48] sm:$0xff]
  %v337 = vld [vmem:[%s3 + $0x50] sm:$0xff]
  %v338 = vld [vmem:[%s3 + $0x58] sm:$0xff]
  %v339 = vld [vmem:[%s3 + $0x60] sm:$0xff]
  %v340 = vld [vmem:[%s3 + $0x68] sm:$0xff]
  %v341 = vld [vmem:[%s3 + $0x70] sm:$0xff]
  %v342 = vld [vmem:[%s3 + $0x78] sm:$0xff]
  %343 = vmatprep.subr.mxu0 0.0
  %344 = vmatpush1.msra.mxu0 %v327
  %345 = vmatprep.subr.mxu0 0.0
  %346 = vmatpush1.msra.mxu0 %v328
  %347 = vmatprep.subr.mxu0 0.0
  %348 = vmatpush1.msra.mxu0 %v329
  %349 = vmatprep.subr.mxu0 0.0
  %350 = vmatpush1.msra.mxu0 %v330
  %351 = vmatprep.subr.mxu0 0.0
  %352 = vmatpush1.msra.mxu0 %v331
  %353 = vmatprep.subr.mxu0 0.0
  %354 = vmatpush1.msra.mxu0 %v332
  %355 = vmatprep.subr.mxu0 0.0
  %356 = vmatpush1.msra.mxu0 %v333
  %357 = vmatprep.subr.mxu0 0.0
  %358 = vmatpush1.msra.mxu0 %v334
  %359 = vmatprep.subr.mxu0 0.0
  %360 = vmatpush1.msra.mxu0 %v335
  %361 = vmatprep.subr.mxu0 0.0
  %362 = vmatpush1.msra.mxu0 %v336
  %363 = vmatprep.subr.mxu0 0.0
  %364 = vmatpush1.msra.mxu0 %v337
  %365 = vmatprep.subr.mxu0 0.0
  %366 = vmatpush1.msra.mxu0 %v338
  %367 = vmatprep.subr.mxu0 0.0
  %368 = vmatpush1.msra.mxu0 %v339
  %369 = vmatprep.subr.mxu0 0.0
  %370 = vmatpush1.msra.mxu0 %v340
  %371 = vmatprep.subr.mxu0 0.0
  %372 = vmatpush1.msra.mxu0 %v341
  %373 = vmatprep.subr.mxu0 0.0
  %374 = vmatpush1.msra.mxu0 %v342
  %375 = vmatprep.subr.mxu0 0.0
  %376 = vmatpush1.msra.mxu0 0.0
  %377 = vmatprep.subr.mxu0 0.0
  %378 = vmatpush1.msra.mxu0 0.0
  %379 = vmatprep.subr.mxu0 0.0
  %380 = vmatpush1.msra.mxu0 0.0
  %381 = vmatprep.subr.mxu0 0.0
  %382 = vmatpush1.msra.mxu0 0.0
  %383 = vmatprep.subr.mxu0 0.0
  %384 = vmatpush1.msra.mxu0 0.0
  %385 = vmatprep.subr.mxu0 0.0
  %386 = vmatpush1.msra.mxu0 0.0
  %387 = vmatprep.subr.mxu0 0.0
  %388 = vmatpush1.msra.mxu0 0.0
  %389 = vmatprep.subr.mxu0 0.0
  %390 = vmatpush1.msra.mxu0 0.0
  %391 = vmatprep.subr.mxu0 0.0
  %392 = vmatpush1.msra.mxu0 0.0
  %393 = vmatprep.subr.mxu0 0.0
  %394 = vmatpush1.msra.mxu0 0.0
  %395 = vmatprep.subr.mxu0 0.0
  %396 = vmatpush1.msra.mxu0 0.0
  %397 = vmatprep.subr.mxu0 0.0
  %398 = vmatpush1.msra.mxu0 0.0
  %399 = vmatprep.subr.mxu0 0.0
  %400 = vmatpush1.msra.mxu0 0.0
  %401 = vmatprep.subr.mxu0 0.0
  %402 = vmatpush1.msra.mxu0 0.0
  %403 = vmatprep.subr.mxu0 0.0
  %404 = vmatpush1.msra.mxu0 0.0
  %405 = vmatprep.subr.mxu0 0.0
  %406 = vmatpush1.msra.mxu0 0.0
  %407 = vmatprep.mubr.f32.mxu0 0.0
  %408 = vmatmul.mubr.f32.gmra.mrb[0].mxu0 %v295
  %v409 = vpop.f32.mrb[0].mxu0
  %v410 = vadd.f32 0.0, %v409
  %v411 = vpop.f32.mrb[0].mxu0
  %412 = vmatprep.mubr.f32.mxu0 0.0
  %413 = vmatmul.mubr.f32.gmra.mrb[0].mxu0 %v296
  %v414 = vpop.f32.mrb[0].mxu0
  %v415 = vadd.f32 0.0, %v414
  %v416 = vpop.f32.mrb[0].mxu0
  %417 = vmatprep.mubr.f32.mxu0 0.0
  %418 = vmatmul.mubr.f32.gmra.mrb[0].mxu0 %v297
  %v419 = vpop.f32.mrb[0].mxu0
  %v420 = vadd.f32 0.0, %v419
  %v421 = vpop.f32.mrb[0].mxu0
  %422 = vmatprep.mubr.f32.mxu0 0.0
  %423 = vmatmul.mubr.f32.gmra.mrb[0].mxu0 %v298
  %v424 = vpop.f32.mrb[0].mxu0
  %v425 = vadd.f32 0.0, %v424
  %v426 = vpop.f32.mrb[0].mxu0
  %427 = vmatprep.mubr.f32.mxu0 0.0
  %428 = vmatmul.mubr.f32.gmra.mrb[0].mxu0 %v299
  %v429 = vpop.f32.mrb[0].mxu0
  %v430 = vadd.f32 0.0, %v429
  %v431 = vpop.f32.mrb[0].mxu0
  %432 = vmatprep.mubr.f32.mxu0 0.0
  %433 = vmatmul.mubr.f32.gmra.mrb[0].mxu0 %v300
  %v434 = vpop.f32.mrb[0].mxu0
  %v435 = vadd.f32 0.0, %v434
  %v436 = vpop.f32.mrb[0].mxu0
  %437 = vmatprep.mubr.f32.mxu0 0.0
  %438 = vmatmul.mubr.f32.gmra.mrb[0].mxu0 %v301
  %v439 = vpop.f32.mrb[0].mxu0
  %v440 = vadd.f32 0.0, %v439
  %v441 = vpop.f32.mrb[0].mxu0
  %442 = vmatprep.mubr.f32.mxu0 0.0
  %443 = vmatmul.mubr.f32.gmra.mrb[0].mxu0 %v302
  %v444 = vpop.f32.mrb[0].mxu0
  %v445 = vadd.f32 0.0, %v444
  %v446 = vpop.f32.mrb[0].mxu0
  %447 = vmatprep.mubr.f32.mxu0 0.0
  %448 = vmatmul.mubr.f32.gmra.mrb[0].mxu0 %v303
  %v449 = vpop.f32.mrb[0].mxu0
  %v450 = vadd.f32 0.0, %v449
  %v451 = vpop.f32.mrb[0].mxu0
  %452 = vmatprep.mubr.f32.mxu0 0.0
  %453 = vmatmul.mubr.f32.gmra.mrb[0].mxu0 %v304
  %v454 = vpop.f32.mrb[0].mxu0
  %v455 = vadd.f32 0.0, %v454
  %v456 = vpop.f32.mrb[0].mxu0
  %457 = vmatprep.mubr.f32.mxu0 0.0
  %458 = vmatmul.mubr.f32.gmra.mrb[0].mxu0 %v305
  %v459 = vpop.f32.mrb[0].mxu0
  %v460 = vadd.f32 0.0, %v459
  %v461 = vpop.f32.mrb[0].mxu0
  %462 = vmatprep.mubr.f32.mxu0 0.0
  %463 = vmatmul.mubr.f32.gmra.mrb[0].mxu0 %v306
  %v464 = vpop.f32.mrb[0].mxu0
  %v465 = vadd.f32 0.0, %v464
  %v466 = vpop.f32.mrb[0].mxu0
  %467 = vmatprep.mubr.f32.mxu0 0.0
  %468 = vmatmul.mubr.f32.gmra.mrb[0].mxu0 %v307
  %v469 = vpop.f32.mrb[0].mxu0
  %v470 = vadd.f32 0.0, %v469
  %v471 = vpop.f32.mrb[0].mxu0
  %472 = vmatprep.mubr.f32.mxu0 0.0
  %473 = vmatmul.mubr.f32.gmra.mrb[0].mxu0 %v308
  %v474 = vpop.f32.mrb[0].mxu0
  %v475 = vadd.f32 0.0, %v474
  %v476 = vpop.f32.mrb[0].mxu0
  %477 = vmatprep.mubr.f32.mxu0 0.0
  %478 = vmatmul.mubr.f32.gmra.mrb[0].mxu0 %v309
  %v479 = vpop.f32.mrb[0].mxu0
  %v480 = vadd.f32 0.0, %v479
  %v481 = vpop.f32.mrb[0].mxu0
  %482 = vmatprep.mubr.f32.mxu0 0.0
  %483 = vmatmul.mubr.f32.gmra.mrb[0].mxu0 %v310
  %v484 = vpop.f32.mrb[0].mxu0
  %v485 = vadd.f32 0.0, %v484
  %v486 = vpop.f32.mrb[0].mxu0
  %487 = vdwg.mxu0
  %v488 = vadd.f32 %v311, %v410
  %v489 = vadd.f32 %v312, %v415
  %v490 = vadd.f32 %v313, %v420
  %v491 = vadd.f32 %v314, %v425
  %v492 = vadd.f32 %v315, %v430
  %v493 = vadd.f32 %v316, %v435
  %v494 = vadd.f32 %v317, %v440
  %v495 = vadd.f32 %v318, %v445
  %v496 = vadd.f32 %v319, %v450
  %v497 = vadd.f32 %v320, %v455
  %v498 = vadd.f32 %v321, %v460
  %v499 = vadd.f32 %v322, %v465
  %v500 = vadd.f32 %v323, %v470
  %v501 = vadd.f32 %v324, %v475
  %v502 = vadd.f32 %v325, %v480
  %v503 = vadd.f32 %v326, %v485
  %504 = vst [vmem:[#allocation2] sm:$0xff] %v488
  %505 = vst [vmem:[#allocation2 + $0x8] sm:$0xff] %v489
  %506 = vst [vmem:[#allocation2 + $0x10] sm:$0xff] %v490
  %507 = vst [vmem:[#allocation2 + $0x18] sm:$0xff] %v491
  %508 = vst [vmem:[#allocation2 + $0x20] sm:$0xff] %v492
  %509 = vst [vmem:[#allocation2 + $0x28] sm:$0xff] %v493
  %510 = vst [vmem:[#allocation2 + $0x30] sm:$0xff] %v494
  %511 = vst [vmem:[#allocation2 + $0x38] sm:$0xff] %v495
  %512 = vst [vmem:[#allocation2 + $0x40] sm:$0xff] %v496
  %513 = vst [vmem:[#allocation2 + $0x48] sm:$0xff] %v497
  %514 = vst [vmem:[#allocation2 + $0x50] sm:$0xff] %v498
  %515 = vst [vmem:[#allocation2 + $0x58] sm:$0xff] %v499
  %516 = vst [vmem:[#allocation2 + $0x60] sm:$0xff] %v500
  %517 = vst [vmem:[#allocation2 + $0x68] sm:$0xff] %v501
  %518 = vst [vmem:[#allocation2 + $0x70] sm:$0xff] %v502
  %519 = vst [vmem:[#allocation2 + $0x78] sm:$0xff] %v503
  // Predicated region
  $region26: #{mlp_pallas.1} parent=0 // pred_check
    %p520 = pneg %p20
  $region27: #{mlp_pallas.1} parent=0 // pred_check_branch
    %522 = sbr.rel (%p520) target = $region29
  $region28: #{mlp_pallas.1} parent=0 // pred_region
    %v523 = vld [vmem:[#allocation2] sm:$0xff]
    %v524 = vld [vmem:[#allocation2 + $0x8] sm:$0xff]
    %v525 = vld [vmem:[#allocation2 + $0x10] sm:$0xff]
    %v526 = vld [vmem:[#allocation2 + $0x18] sm:$0xff]
    %v527 = vld [vmem:[#allocation2 + $0x20] sm:$0xff]
    %v528 = vld [vmem:[#allocation2 + $0x28] sm:$0xff]
    %v529 = vld [vmem:[#allocation2 + $0x30] sm:$0xff]
    %v530 = vld [vmem:[#allocation2 + $0x38] sm:$0xff]
    %v531 = vld [vmem:[#allocation2 + $0x40] sm:$0xff]
    %v532 = vld [vmem:[#allocation2 + $0x48] sm:$0xff]
    %v533 = vld [vmem:[#allocation2 + $0x50] sm:$0xff]
    %v534 = vld [vmem:[#allocation2 + $0x58] sm:$0xff]
    %v535 = vld [vmem:[#allocation2 + $0x60] sm:$0xff]
    %v536 = vld [vmem:[#allocation2 + $0x68] sm:$0xff]
    %v537 = vld [vmem:[#allocation2 + $0x70] sm:$0xff]
    %v538 = vld [vmem:[#allocation2 + $0x78] sm:$0xff]
    %539 = vst [vmem:[%s5] sm:$0xff] %v523
    %540 = vst [vmem:[%s5 + $0x8] sm:$0xff] %v524
    %541 = vst [vmem:[%s5 + $0x10] sm:$0xff] %v525
    %542 = vst [vmem:[%s5 + $0x18] sm:$0xff] %v526
    %543 = vst [vmem:[%s5 + $0x20] sm:$0xff] %v527
    %544 = vst [vmem:[%s5 + $0x28] sm:$0xff] %v528
    %545 = vst [vmem:[%s5 + $0x30] sm:$0xff] %v529
    %546 = vst [vmem:[%s5 + $0x38] sm:$0xff] %v530
    %547 = vst [vmem:[%s5 + $0x40] sm:$0xff] %v531
    %548 = vst [vmem:[%s5 + $0x48] sm:$0xff] %v532
    %549 = vst [vmem:[%s5 + $0x50] sm:$0xff] %v533
    %550 = vst [vmem:[%s5 + $0x58] sm:$0xff] %v534
    %551 = vst [vmem:[%s5 + $0x60] sm:$0xff] %v535
    %552 = vst [vmem:[%s5 + $0x68] sm:$0xff] %v536
    %553 = vst [vmem:[%s5 + $0x70] sm:$0xff] %v537
    %554 = vst [vmem:[%s5 + $0x78] sm:$0xff] %v538
  $region29: #{mlp_pallas.1} parent=0 // pred_fallthru
    _
  // Predicated region
  $region30: #{mlp_pallas.1} parent=0 // pred_check
    _
  $region31: #{mlp_pallas.1} parent=0 // pred_check_branch
    %556 = sbr.rel (0) target = $region33
  $region32: #{mlp_pallas.1} parent=0 // pred_region
    _
  $region33: #{mlp_pallas.1} parent=0 // pred_fallthru
    _
  // Predicated region
  $region34: #{mlp_pallas.1} parent=0 // pred_check
    _
  $region35: #{mlp_pallas.1} parent=0 // pred_check_branch
    %558 = sbr.rel (0) target = $region37
  $region36: #{mlp_pallas.1} parent=0 // pred_region
    _
  $region37: #{mlp_pallas.1} parent=0 // pred_fallthru
    _

</llo_original>
